<compile_context>
chip_gen: v7x
topology: tpu7x:2x2x1
jax: 0.10.0
libtpu: 0.0.40
codegen_flags: <defaults>
</compile_context>

<pallas_src>
import functools

import jax
import jax.numpy as jnp
from jax.experimental import pallas as pl
from jax.experimental.pallas import tpu as pltpu


_VMEM = pl.BlockSpec(memory_space=pltpu.MemorySpace.VMEM)
_SMEM = pl.BlockSpec(memory_space=pltpu.MemorySpace.SMEM)

# Cross-generation default ROI tile: fits comfortably in v5e's 16 MiB default
# scoped VMEM and v7x's 64 MiB physical VMEM; raise toward 512-1024 on v6e.
_TILE_N = 256


def _round_up(x, m):
    return ((x + m - 1) // m) * m


# --------------------------- kernel A: prototypes ---------------------------- #

def _prototype_kernel(scal_ref, sup_ref, bg_ref, w1_ref, b1_ref, w2_ref, b2_ref,
                      sup_out_ref, s_ref, st_ref, *, way, shot):
    """Auto-encode support/bg, build class prototypes S and S_tilde = rho*M^{-1}S.

    scal_ref : SMEM (2,)  [lam, rho]
    sup_ref  : (way*shot, C) bf16 raw support features
    bg_ref   : (way*shot, C) bf16 raw background features
    sup_out_ref : (way*shot, C) f32 auto-encoded support (module output)
    s_ref    : ((way+1)*shot, C) f32 stacked class prototype rows
    st_ref   : ((way+1)*shot, C) f32 stacked rho * M^{-1} S rows
    """
    lam = scal_ref[0]
    rho = scal_ref[1]
    w1 = w1_ref[...]
    w2 = w2_ref[...]
    b1 = b1_ref[...]
    b2 = b2_ref[...]

    def auto_encode(x):
        # Linear -> Dropout(eval mode: identity) -> Linear; bf16 MXU, f32 acc.
        h = jnp.dot(x, w1, preferred_element_type=jnp.float32) + b1
        return jnp.dot(h.astype(w2.dtype), w2,
                       preferred_element_type=jnp.float32) + b2

    sup_ae = auto_encode(sup_ref[...])          # (way*shot, C) f32
    bg_ae = auto_encode(bg_ref[...])            # (way*shot, C) f32
    sup_out_ref[...] = sup_ae

    # Class prototype rows from live values (no VMEM write-then-read).
    inv_way = 1.0 / way
    bg_rows = []
    for s in range(shot):
        acc = bg_ae[s:s + 1, :]
        for v in range(1, way):
            acc = acc + bg_ae[v * shot + s:v * shot + s + 1, :]
        bg_rows.append(acc * inv_way)
    cls_rows = [bg_rows]
    for w in range(way):
        cls_rows.append([sup_ae[w * shot + s:w * shot + s + 1, :]
                         for s in range(shot)])

    s_rows_out = []
    st_rows_out = []
    for w in range(way + 1):
        S = cls_rows[w]                          # shot x (1, C) rows of S_w

        # Gram matrix  M = S S^T + lam I  as (1,1) blocks (f32, VPU+XLU only).
        mm = [[None] * shot for _ in range(shot)]
        for i in range(shot):
            for j in range(i, shot):
                g = jnp.sum(S[i] * S[j], axis=1, keepdims=True)
                if i == j:
                    g = g + lam
                mm[i][j] = g
                mm[j][i] = g

        # Unrolled Gauss-Jordan on [M | I]; M is SPD so no pivoting is needed.
        # TODO(synk): for shot >= 4 pack [M | I] into one (shot, 2*shot) tile and
        # eliminate with broadcast rows to keep live vreg count O(shot).
        aug = [
            [mm[i][j] for j in range(shot)]
            + [jnp.full((1, 1), 1.0 if i == j else 0.0, jnp.float32)
               for j in range(shot)]
            for i in range(shot)
        ]
        for k in range(shot):
            piv_inv = 1.0 / aug[k][k]
            aug[k] = [x * piv_inv for x in aug[k]]
            for i in range(shot):
                if i != k:
                    f = aug[i][k]
                    aug[i] = [aug[i][j] - f * aug[k][j] for j in range(2 * shot)]
        minv = [[aug[i][shot + j] for j in range(shot)] for i in range(shot)]

        # S_tilde = rho * M^{-1} S  (rho folded in so kernel B skips a (N,C) mul).
        for i in range(shot):
            s_rows_out.append(S[i])
            st_i = minv[i][0] * S[0]
            for j in range(1, shot):
                st_i = st_i + minv[i][j] * S[j]
            st_rows_out.append(st_i * rho)

    s_ref[...] = jnp.concatenate(s_rows_out, axis=0)
    st_ref[...] = jnp.concatenate(st_rows_out, axis=0)


# --------------------------- kernel B: per-ROI work --------------------------- #

def _roi_kernel(scal_ref, box_ref, w1_ref, b1_ref, w2_ref, b2_ref,
                wb_ref, bb_ref, s_t_ref, st_ref, scores_ref, bbox_ref,
                *, way, shot):
    """Per-ROI auto-encode + bbox head + Woodbury reconstruction + metric.

    scal_ref : SMEM (1,)  [-scale.exp() / C]
    box_ref  : (TILE_N, C) bf16 raw flattened box features (pipelined tile)
    s_t_ref  : (C, (way+1)*shot) f32 prototype rows transposed (resident)
    st_ref   : ((way+1)*shot, C) f32 rho * M^{-1} S rows (resident)
    scores_ref : (TILE_N, SCORE_PAD) lane-dense score slab
    bbox_ref   : (TILE_N, BBOX_PAD)  lane-dense bbox slab
    """
    neg_scale_over_c = scal_ref[0]
    n_way1 = way + 1

    box = box_ref[...]                           # (TILE_N, C) bf16
    w1 = w1_ref[...]
    w2 = w2_ref[...]

    # Auto-encoder (Dropout is identity in eval mode); bf16 MXU, f32 acc.
    h = jnp.dot(box, w1, preferred_element_type=jnp.float32) + b1_ref[...]
    q = jnp.dot(h.astype(w2.dtype), w2, preferred_element_type=jnp.float32) + b2_ref[...]

    # bbox head on the raw (un-encoded) box features; weights pre-padded to a
    # 128-lane-dense width host-side, so this store is a full unmasked vst.
    bbox_ref[...] = (jnp.dot(box, wb_ref[...], preferred_element_type=jnp.float32)
                     + bb_ref[...])

    # P[:, w*shot + j] = <q_n, S_w_j>  -- one MXU matmul for all classes (f32).
    p_all = jnp.dot(q, s_t_ref[...], preferred_element_type=jnp.float32)

    eu_cols = []
    for w in range(n_way1):
        p_w = p_all[:, w * shot:(w + 1) * shot]                  # (TILE_N, shot)
        st_w = st_ref[pl.ds(w * shot, shot), :]                  # (shot, C)
        q_bar = jnp.dot(p_w, st_w, preferred_element_type=jnp.float32)  # rho folded
        diff = q_bar - q
        # In-place per-class reduction (XLU lane reduce) -> (TILE_N, 1).
        eu_cols.append(jnp.sum(diff * diff, axis=1, keepdims=True))

    scores = jnp.concatenate(eu_cols, axis=1) * neg_scale_over_c  # (TILE_N, n_way1)
    pad = scores_ref.shape[1] - n_way1
    if pad > 0:
        scores = jnp.concatenate(
            [scores, jnp.zeros((scores.shape[0], pad), jnp.float32)], axis=1)
    scores_ref[...] = scores


# ------------------------------ pallas_call glue ----------------------------- #

def _vmem_limit_bytes(tile_n, c, bbox_pad, score_pad, nws):
    # Resident (double-buffered conservatively) + per-tile pipelined + working set.
    resident = 2 * (2 * c * c * 2 + c * bbox_pad * 2 + 2 * c * 4 + bbox_pad * 4
                    + c * nws * 4 + nws * c * 4)
    per_tile = 2 * (tile_n * c * 2 + tile_n * score_pad * 4 + tile_n * bbox_pad * 4)
    work = 8 * tile_n * c * 4 + 2 * tile_n * max(nws, 128) * 4
    est = resident + per_tile + work
    # 2x headroom, floor 32 MiB, cap 64 MiB so the same value is safe on v7x.
    return int(min(64 * 1024 * 1024, max(2 * est, 32 * 1024 * 1024)))


def fr_predict_head_forward(params, support_fc, bg_fc, query_fc, box_fc, way, shot):
    """Mirrors FRPredictHeadWithFlatten.forward (query_fc unused, as in torch)."""
    del query_fc  # unused in the reference implementation as well
    C = params["w_ae1"].shape[0]
    bbox_dim = params["w_bbox"].shape[1]
    n_way1 = way + 1
    ws = way * shot
    nws = n_way1 * shot

    if box_fc.ndim == 4:
        assert box_fc.shape[2:] == (1, 1)
    box_flat = box_fc.reshape(box_fc.shape[0], -1)
    n_roi = box_flat.shape[0]

    # bf16 MXU operands (f32 accumulation inside the kernels); biases stay f32.
    w1 = params["w_ae1"].astype(jnp.bfloat16)
    w2 = params["w_ae2"].astype(jnp.bfloat16)
    b1 = params["b_ae1"].astype(jnp.float32)
    b2 = params["b_ae2"].astype(jnp.float32)

    # Pad bbox weights to a 128-lane-dense output width host-side (zero columns).
    bbox_pad = _round_up(max(bbox_dim, 128), 128)
    wb = jnp.zeros((C, bbox_pad), jnp.bfloat16)
    wb = wb.at[:, :bbox_dim].set(params["w_bbox"].astype(jnp.bfloat16))
    bb = jnp.zeros((1, bbox_pad), jnp.float32)
    bb = bb.at[:, :bbox_dim].set(params["b_bbox"].astype(jnp.float32))

    sup_bf = support_fc.astype(jnp.bfloat16)
    bg_bf = bg_fc.astype(jnp.bfloat16)

    # Tiny scalar prologue (3 exp()'s) stays as one small XLA fusion.
    reg = shot / C
    scal_a = jnp.stack([
        reg * jnp.exp(params["r"][0]) + 1e-6,    # lam
        jnp.exp(params["r"][1]),                 # rho
    ]).astype(jnp.float32)
    scal_b = jnp.stack([-jnp.exp(params["scale"][0]) / C]).astype(jnp.float32)

    # ---- Kernel A: support/bg auto-encode, Gram, inverse, prototypes (once). ----
    proto_kernel = functools.partial(_prototype_kernel, way=way, shot=shot)
    sup_ae, proto_s, proto_st = pl.pallas_call(
        proto_kernel,
        out_shape=(
            jax.ShapeDtypeStruct((ws, C), jnp.float32),
            jax.ShapeDtypeStruct((nws, C), jnp.float32),
            jax.ShapeDtypeStruct((nws, C), jnp.float32),
        ),
        in_specs=[_SMEM] + [_VMEM] * 6,
        out_specs=(_VMEM, _VMEM, _VMEM),
    )(scal_a, sup_bf, bg_bf, w1, b1, w2, b2)

    # One-off layout plumbing outside the kernel: prototype rows transposed so
    # kernel B computes P = q @ S^T with a single lane-dense MXU matmul.
    proto_s_t = proto_s.T                         # (C, nws)

    # ---- Kernel B: gridded over ROI rows, parallel across TensorCores. ----
    tile_n = min(_TILE_N, _round_up(n_roi, 8))
    n_pad = _round_up(n_roi, tile_n)
    box_bf = box_flat.astype(jnp.bfloat16)
    if n_pad != n_roi:
        box_bf = jnp.pad(box_bf, ((0, n_pad - n_roi), (0, 0)))
    score_pad = _round_up(max(n_way1, 128), 128)

    roi_kernel = functools.partial(_roi_kernel, way=way, shot=shot)
    scores_full, bbox_full = pl.pallas_call(
        roi_kernel,
        grid=(n_pad // tile_n,),
        out_shape=(
            jax.ShapeDtypeStruct((n_pad, score_pad), jnp.float32),
            jax.ShapeDtypeStruct((n_pad, bbox_pad), jnp.float32),
        ),
        in_specs=[
            _SMEM,                                             # scalars
            pl.BlockSpec((tile_n, C), lambda i: (i, 0)),       # box tile (pipelined)
            pl.BlockSpec((C, C), lambda i: (0, 0)),            # w1 (resident)
            pl.BlockSpec((1, C), lambda i: (0, 0)),            # b1
            pl.BlockSpec((C, C), lambda i: (0, 0)),            # w2
            pl.BlockSpec((1, C), lambda i: (0, 0)),            # b2
            pl.BlockSpec((C, bbox_pad), lambda i: (0, 0)),     # wb
            pl.BlockSpec((1, bbox_pad), lambda i: (0, 0)),     # bb
            pl.BlockSpec((C, nws), lambda i: (0, 0)),          # S^T
            pl.BlockSpec((nws, C), lambda i: (0, 0)),          # rho * M^{-1} S
        ],
        out_specs=(
            pl.BlockSpec((tile_n, score_pad), lambda i: (i, 0)),
            pl.BlockSpec((tile_n, bbox_pad), lambda i: (i, 0)),
        ),
        compiler_params=pltpu.CompilerParams(
            dimension_semantics=("parallel",),
            vmem_limit_bytes=_vmem_limit_bytes(tile_n, C, bbox_pad, score_pad, nws)),
    )(scal_b, box_bf, w1, b1, w2, b2, wb, bb, proto_s_t, proto_st)

    scores = scores_full[:n_roi, :n_way1]
    bbox_deltas = bbox_full[:n_roi, :bbox_dim]
    support = sup_ae.reshape(way, shot, C)
    return scores, bbox_deltas, support


# ------------------------------ pure-JAX reference --------------------------- #

def _reference(params, support_fc, bg_fc, query_fc, box_fc, way, shot):
    del query_fc
    C = params["w_ae1"].shape[0]
    box_flat = box_fc.reshape(box_fc.shape[0], -1)
    bbox = box_flat @ params["w_bbox"] + params["b_bbox"]

    def ae(x):
        h = x @ params["w_ae1"] + params["b_ae1"]
        return h @ params["w_ae2"] + params["b_ae2"]

    sup = ae(support_fc)
    bgx = ae(bg_fc)
    box = ae(box_flat)

    support = sup.reshape(way, shot, C)
    bg = bgx.reshape(way, shot, C).mean(0, keepdims=True)
    sb = jnp.concatenate([bg, support], axis=0)

    lam = (shot / C) * jnp.exp(params["r"][0]) + 1e-6
    rho = jnp.exp(params["r"][1])
    s_st = jnp.einsum("wsc,wtc->wst", sb, sb)
    m_inv = jnp.linalg.inv(s_st + lam * jnp.eye(shot, dtype=jnp.float32)[None])
    hat = jnp.einsum("wcs,wst,wtd->wcd", sb.transpose(0, 2, 1), m_inv, sb)
    q_bar = jnp.einsum("nc,wcd->wnd", box, hat) * rho
    eu = jnp.sum((q_bar - box[None]) ** 2, axis=2).T / C
    scores = -eu * jnp.exp(params["scale"][0])
    return scores, bbox, support


# ----------------------------------- main ------------------------------------ #

if __name__ == "__main__":
    way, shot, C, num_classes = 3, 2, 32, 5
    n_roi = 8

    key = jax.random.PRNGKey(0)
    ks = jax.random.split(key, 10)
    bound = 1.0 / (C ** 0.5)

    params = {
        # cls_auto_encoder: Linear(C,C) -> Dropout -> Linear(C,C), pre-transposed
        "w_ae1": jax.random.uniform(ks[0], (C, C), jnp.float32, -bound, bound),
        "b_ae1": jax.random.uniform(ks[1], (1, C), jnp.float32, -bound, bound),
        "w_ae2": jax.random.uniform(ks[2], (C, C), jnp.float32, -bound, bound),
        "b_ae2": jax.random.uniform(ks[3], (1, C), jnp.float32, -bound, bound),
        # bbox_pred: Linear(C, num_classes*4), stored pre-transposed
        "w_bbox": jax.random.uniform(ks[4], (C, num_classes * 4), jnp.float32, -bound, bound),
        "b_bbox": jax.random.uniform(ks[5], (1, num_classes * 4), jnp.float32, -bound, bound),
        # nn.Parameter(torch.zeros(2)) and nn.Parameter([1.0])
        "r": jnp.zeros((2,), jnp.float32),
        "scale": jnp.array([1.0], jnp.float32),
    }

    support_fc = jax.random.normal(ks[6], (way * shot, C), jnp.float32)
    bg_fc = jax.random.normal(ks[7], (way * shot, C), jnp.float32)
    query_fc = jax.random.normal(ks[8], (way * shot, C), jnp.float32)
    box_fc = jax.random.normal(ks[9], (n_roi, C, 1, 1), jnp.float32)  # NCHW, 1x1 spatial

    out = fr_predict_head_forward(params, support_fc, bg_fc, query_fc, box_fc, way, shot)
    scores, bbox_deltas, support = jax.block_until_ready(out)

    # sanity check against a pure-JAX f32 reference (bf16 MXU operands in-kernel)
    ref_scores, ref_bbox, ref_support = _reference(
        params, support_fc, bg_fc, query_fc, box_fc, way, shot
    )
    assert scores.shape == (n_roi, way + 1)
    assert bbox_deltas.shape == (n_roi, num_classes * 4)
    assert support.shape == (way, shot, C)
    assert jnp.allclose(scores, ref_scores, rtol=2e-2, atol=2e-2)
    assert jnp.allclose(bbox_deltas, ref_bbox, rtol=2e-2, atol=2e-2)
    assert jnp.allclose(support, ref_support, rtol=2e-2, atol=2e-2)

    print("KERNEL_OK")
</pallas_src>

<mosaic_0001>
module attributes {stable_mosaic.version = 11 : i64} {
  func.func @_prototype_kernel(%arg0: memref<2xf32, #tpu.memory_space<smem>>, %arg1: memref<6x32xbf16, #tpu.memory_space<vmem>>, %arg2: memref<6x32xbf16, #tpu.memory_space<vmem>>, %arg3: memref<32x32xbf16, #tpu.memory_space<vmem>>, %arg4: memref<1x32xf32, #tpu.memory_space<vmem>>, %arg5: memref<32x32xbf16, #tpu.memory_space<vmem>>, %arg6: memref<1x32xf32, #tpu.memory_space<vmem>>, %arg7: memref<6x32xf32, #tpu.memory_space<vmem>>, %arg8: memref<8x32xf32, #tpu.memory_space<vmem>>, %arg9: memref<8x32xf32, #tpu.memory_space<vmem>>) attributes {dimension_semantics = [], scalar_prefetch = 0 : i64, scratch_operands = 0 : i64, tpu.core_type = #tpu.core_type<tc>} {
    %c0 = arith.constant 0 : index
    %0 = memref.load %arg0[%c0] : memref<2xf32, #tpu.memory_space<smem>>
    %c1 = arith.constant 1 : index
    %1 = memref.load %arg0[%c1] : memref<2xf32, #tpu.memory_space<smem>>
    %c0_0 = arith.constant 0 : index
    %c0_1 = arith.constant 0 : index
    %2 = vector.load %arg3[%c0_0, %c0_1] : memref<32x32xbf16, #tpu.memory_space<vmem>>, vector<32x32xbf16>
    %c0_2 = arith.constant 0 : index
    %c0_3 = arith.constant 0 : index
    %3 = vector.load %arg5[%c0_2, %c0_3] : memref<32x32xbf16, #tpu.memory_space<vmem>>, vector<32x32xbf16>
    %c0_4 = arith.constant 0 : index
    %c0_5 = arith.constant 0 : index
    %4 = vector.load %arg4[%c0_4, %c0_5] : memref<1x32xf32, #tpu.memory_space<vmem>>, vector<1x32xf32>
    %c0_6 = arith.constant 0 : index
    %c0_7 = arith.constant 0 : index
    %5 = vector.load %arg6[%c0_6, %c0_7] : memref<1x32xf32, #tpu.memory_space<vmem>>, vector<1x32xf32>
    %c0_8 = arith.constant 0 : index
    %c0_9 = arith.constant 0 : index
    %6 = vector.load %arg1[%c0_8, %c0_9] : memref<6x32xbf16, #tpu.memory_space<vmem>>, vector<6x32xbf16>
    %cst = arith.constant dense<0.000000e+00> : vector<6x32xf32>
    %7 = tpu.matmul %6, %2, %cst {dimension_numbers = #tpu.dot_dimension_numbers<[1], [0], [0], [1], [0, 0, 1, 1], [], []>} : vector<6x32xbf16>, vector<32x32xbf16>, vector<6x32xf32> -> vector<6x32xf32>
    %8 = vector.broadcast %4 : vector<1x32xf32> to vector<6x32xf32>
    %9 = arith.addf %7, %8 : vector<6x32xf32>
    %10 = arith.truncf %9 : vector<6x32xf32> to vector<6x32xbf16>
    %cst_10 = arith.constant dense<0.000000e+00> : vector<6x32xf32>
    %11 = tpu.matmul %10, %3, %cst_10 {dimension_numbers = #tpu.dot_dimension_numbers<[1], [0], [0], [1], [0, 0, 1, 1], [], []>} : vector<6x32xbf16>, vector<32x32xbf16>, vector<6x32xf32> -> vector<6x32xf32>
    %12 = vector.broadcast %5 : vector<1x32xf32> to vector<6x32xf32>
    %13 = arith.addf %11, %12 : vector<6x32xf32>
    %c0_11 = arith.constant 0 : index
    %c0_12 = arith.constant 0 : index
    %14 = vector.load %arg2[%c0_11, %c0_12] : memref<6x32xbf16, #tpu.memory_space<vmem>>, vector<6x32xbf16>
    %cst_13 = arith.constant dense<0.000000e+00> : vector<6x32xf32>
    %15 = tpu.matmul %14, %2, %cst_13 {dimension_numbers = #tpu.dot_dimension_numbers<[1], [0], [0], [1], [0, 0, 1, 1], [], []>} : vector<6x32xbf16>, vector<32x32xbf16>, vector<6x32xf32> -> vector<6x32xf32>
    %16 = vector.broadcast %4 : vector<1x32xf32> to vector<6x32xf32>
    %17 = arith.addf %15, %16 : vector<6x32xf32>
    %18 = arith.truncf %17 : vector<6x32xf32> to vector<6x32xbf16>
    %cst_14 = arith.constant dense<0.000000e+00> : vector<6x32xf32>
    %19 = tpu.matmul %18, %3, %cst_14 {dimension_numbers = #tpu.dot_dimension_numbers<[1], [0], [0], [1], [0, 0, 1, 1], [], []>} : vector<6x32xbf16>, vector<32x32xbf16>, vector<6x32xf32> -> vector<6x32xf32>
    %20 = vector.broadcast %5 : vector<1x32xf32> to vector<6x32xf32>
    %21 = arith.addf %19, %20 : vector<6x32xf32>
    %c0_15 = arith.constant 0 : index
    %c0_16 = arith.constant 0 : index
    %22 = vector.load %arg7[%c0_15, %c0_16] : memref<6x32xf32, #tpu.memory_space<vmem>>, vector<6x32xf32>
    tpu.vector_store %arg7[%c0_15, %c0_16], %13 {strides = array<i32>} : memref<6x32xf32, #tpu.memory_space<vmem>>, vector<6x32xf32>,
    %23 = vector.extract_strided_slice %21 {offsets = [0, 0], sizes = [1, 32], strides = [1, 1]} : vector<6x32xf32> to vector<1x32xf32>
    %24 = vector.extract_strided_slice %21 {offsets = [2, 0], sizes = [1, 32], strides = [1, 1]} : vector<6x32xf32> to vector<1x32xf32>
    %25 = arith.addf %23, %24 : vector<1x32xf32>
    %26 = vector.extract_strided_slice %21 {offsets = [4, 0], sizes = [1, 32], strides = [1, 1]} : vector<6x32xf32> to vector<1x32xf32>
    %27 = arith.addf %25, %26 : vector<1x32xf32>
    %cst_17 = arith.constant 0.333333343 : f32
    %28 = vector.broadcast %cst_17 : f32 to vector<1x32xf32>
    %29 = arith.mulf %27, %28 : vector<1x32xf32>
    %30 = vector.extract_strided_slice %21 {offsets = [1, 0], sizes = [1, 32], strides = [1, 1]} : vector<6x32xf32> to vector<1x32xf32>
    %31 = vector.extract_strided_slice %21 {offsets = [3, 0], sizes = [1, 32], strides = [1, 1]} : vector<6x32xf32> to vector<1x32xf32>
    %32 = arith.addf %30, %31 : vector<1x32xf32>
    %33 = vector.extract_strided_slice %21 {offsets = [5, 0], sizes = [1, 32], strides = [1, 1]} : vector<6x32xf32> to vector<1x32xf32>
    %34 = arith.addf %32, %33 : vector<1x32xf32>
    %cst_18 = arith.constant 0.333333343 : f32
    %35 = vector.broadcast %cst_18 : f32 to vector<1x32xf32>
    %36 = arith.mulf %34, %35 : vector<1x32xf32>
    %37 = vector.extract_strided_slice %13 {offsets = [0, 0], sizes = [1, 32], strides = [1, 1]} : vector<6x32xf32> to vector<1x32xf32>
    %38 = vector.extract_strided_slice %13 {offsets = [1, 0], sizes = [1, 32], strides = [1, 1]} : vector<6x32xf32> to vector<1x32xf32>
    %39 = vector.extract_strided_slice %13 {offsets = [2, 0], sizes = [1, 32], strides = [1, 1]} : vector<6x32xf32> to vector<1x32xf32>
    %40 = vector.extract_strided_slice %13 {offsets = [3, 0], sizes = [1, 32], strides = [1, 1]} : vector<6x32xf32> to vector<1x32xf32>
    %41 = vector.extract_strided_slice %13 {offsets = [4, 0], sizes = [1, 32], strides = [1, 1]} : vector<6x32xf32> to vector<1x32xf32>
    %42 = vector.extract_strided_slice %13 {offsets = [5, 0], sizes = [1, 32], strides = [1, 1]} : vector<6x32xf32> to vector<1x32xf32>
    %43 = arith.mulf %29, %29 : vector<1x32xf32>
    %cst_19 = arith.constant dense<0.000000e+00> : vector<1xf32>
    %44 = vector.multi_reduction <add>, %43, %cst_19 [1] : vector<1x32xf32> to vector<1xf32>
    %45 = vector.shape_cast %44 : vector<1xf32> to vector<1x1xf32>
    %46 = vector.broadcast %0 : f32 to vector<1x1xf32>
    %47 = arith.addf %45, %46 : vector<1x1xf32>
    %48 = arith.mulf %29, %36 : vector<1x32xf32>
    %cst_20 = arith.constant dense<0.000000e+00> : vector<1xf32>
    %49 = vector.multi_reduction <add>, %48, %cst_20 [1] : vector<1x32xf32> to vector<1xf32>
    %50 = vector.shape_cast %49 : vector<1xf32> to vector<1x1xf32>
    %51 = arith.mulf %36, %36 : vector<1x32xf32>
    %cst_21 = arith.constant dense<0.000000e+00> : vector<1xf32>
    %52 = vector.multi_reduction <add>, %51, %cst_21 [1] : vector<1x32xf32> to vector<1xf32>
    %53 = vector.shape_cast %52 : vector<1xf32> to vector<1x1xf32>
    %54 = vector.broadcast %0 : f32 to vector<1x1xf32>
    %55 = arith.addf %53, %54 : vector<1x1xf32>
    %cst_22 = arith.constant 1.000000e+00 : f32
    %56 = vector.broadcast %cst_22 : f32 to vector<1x1xf32>
    %cst_23 = arith.constant 0.000000e+00 : f32
    %57 = vector.broadcast %cst_23 : f32 to vector<1x1xf32>
    %cst_24 = arith.constant 0.000000e+00 : f32
    %58 = vector.broadcast %cst_24 : f32 to vector<1x1xf32>
    %cst_25 = arith.constant 1.000000e+00 : f32
    %59 = vector.broadcast %cst_25 : f32 to vector<1x1xf32>
    %cst_26 = arith.constant 1.000000e+00 : f32
    %60 = vector.broadcast %cst_26 : f32 to vector<1x1xf32>
    %61 = arith.divf %60, %47 : vector<1x1xf32>
    %62 = arith.mulf %50, %61 : vector<1x1xf32>
    %63 = arith.mulf %56, %61 : vector<1x1xf32>
    %64 = arith.mulf %57, %61 : vector<1x1xf32>
    %65 = arith.mulf %50, %62 : vector<1x1xf32>
    %66 = arith.subf %55, %65 : vector<1x1xf32>
    %67 = arith.mulf %50, %63 : vector<1x1xf32>
    %68 = arith.subf %58, %67 : vector<1x1xf32>
    %69 = arith.mulf %50, %64 : vector<1x1xf32>
    %70 = arith.subf %59, %69 : vector<1x1xf32>
    %cst_27 = arith.constant 1.000000e+00 : f32
    %71 = vector.broadcast %cst_27 : f32 to vector<1x1xf32>
    %72 = arith.divf %71, %66 : vector<1x1xf32>
    %73 = arith.mulf %68, %72 : vector<1x1xf32>
    %74 = arith.mulf %70, %72 : vector<1x1xf32>
    %75 = arith.mulf %62, %73 : vector<1x1xf32>
    %76 = arith.subf %63, %75 : vector<1x1xf32>
    %77 = arith.mulf %62, %74 : vector<1x1xf32>
    %78 = arith.subf %64, %77 : vector<1x1xf32>
    %79 = vector.broadcast %76 : vector<1x1xf32> to vector<1x32xf32>
    %80 = arith.mulf %79, %29 : vector<1x32xf32>
    %81 = vector.broadcast %78 : vector<1x1xf32> to vector<1x32xf32>
    %82 = arith.mulf %81, %36 : vector<1x32xf32>
    %83 = arith.addf %80, %82 : vector<1x32xf32>
    %84 = vector.broadcast %1 : f32 to vector<1x32xf32>
    %85 = arith.mulf %83, %84 : vector<1x32xf32>
    %86 = vector.broadcast %73 : vector<1x1xf32> to vector<1x32xf32>
    %87 = arith.mulf %86, %29 : vector<1x32xf32>
    %88 = vector.broadcast %74 : vector<1x1xf32> to vector<1x32xf32>
    %89 = arith.mulf %88, %36 : vector<1x32xf32>
    %90 = arith.addf %87, %89 : vector<1x32xf32>
    %91 = vector.broadcast %1 : f32 to vector<1x32xf32>
    %92 = arith.mulf %90, %91 : vector<1x32xf32>
    %93 = arith.mulf %37, %37 : vector<1x32xf32>
    %cst_28 = arith.constant dense<0.000000e+00> : vector<1xf32>
    %94 = vector.multi_reduction <add>, %93, %cst_28 [1] : vector<1x32xf32> to vector<1xf32>
    %95 = vector.shape_cast %94 : vector<1xf32> to vector<1x1xf32>
    %96 = vector.broadcast %0 : f32 to vector<1x1xf32>
    %97 = arith.addf %95, %96 : vector<1x1xf32>
    %98 = arith.mulf %37, %38 : vector<1x32xf32>
    %cst_29 = arith.constant dense<0.000000e+00> : vector<1xf32>
    %99 = vector.multi_reduction <add>, %98, %cst_29 [1] : vector<1x32xf32> to vector<1xf32>
    %100 = vector.shape_cast %99 : vector<1xf32> to vector<1x1xf32>
    %101 = arith.mulf %38, %38 : vector<1x32xf32>
    %cst_30 = arith.constant dense<0.000000e+00> : vector<1xf32>
    %102 = vector.multi_reduction <add>, %101, %cst_30 [1] : vector<1x32xf32> to vector<1xf32>
    %103 = vector.shape_cast %102 : vector<1xf32> to vector<1x1xf32>
    %104 = vector.broadcast %0 : f32 to vector<1x1xf32>
    %105 = arith.addf %103, %104 : vector<1x1xf32>
    %cst_31 = arith.constant 1.000000e+00 : f32
    %106 = vector.broadcast %cst_31 : f32 to vector<1x1xf32>
    %cst_32 = arith.constant 0.000000e+00 : f32
    %107 = vector.broadcast %cst_32 : f32 to vector<1x1xf32>
    %cst_33 = arith.constant 0.000000e+00 : f32
    %108 = vector.broadcast %cst_33 : f32 to vector<1x1xf32>
    %cst_34 = arith.constant 1.000000e+00 : f32
    %109 = vector.broadcast %cst_34 : f32 to vector<1x1xf32>
    %cst_35 = arith.constant 1.000000e+00 : f32
    %110 = vector.broadcast %cst_35 : f32 to vector<1x1xf32>
    %111 = arith.divf %110, %97 : vector<1x1xf32>
    %112 = arith.mulf %100, %111 : vector<1x1xf32>
    %113 = arith.mulf %106, %111 : vector<1x1xf32>
    %114 = arith.mulf %107, %111 : vector<1x1xf32>
    %115 = arith.mulf %100, %112 : vector<1x1xf32>
    %116 = arith.subf %105, %115 : vector<1x1xf32>
    %117 = arith.mulf %100, %113 : vector<1x1xf32>
    %118 = arith.subf %108, %117 : vector<1x1xf32>
    %119 = arith.mulf %100, %114 : vector<1x1xf32>
    %120 = arith.subf %109, %119 : vector<1x1xf32>
    %cst_36 = arith.constant 1.000000e+00 : f32
    %121 = vector.broadcast %cst_36 : f32 to vector<1x1xf32>
    %122 = arith.divf %121, %116 : vector<1x1xf32>
    %123 = arith.mulf %118, %122 : vector<1x1xf32>
    %124 = arith.mulf %120, %122 : vector<1x1xf32>
    %125 = arith.mulf %112, %123 : vector<1x1xf32>
    %126 = arith.subf %113, %125 : vector<1x1xf32>
    %127 = arith.mulf %112, %124 : vector<1x1xf32>
    %128 = arith.subf %114, %127 : vector<1x1xf32>
    %129 = vector.broadcast %126 : vector<1x1xf32> to vector<1x32xf32>
    %130 = arith.mulf %129, %37 : vector<1x32xf32>
    %131 = vector.broadcast %128 : vector<1x1xf32> to vector<1x32xf32>
    %132 = arith.mulf %131, %38 : vector<1x32xf32>
    %133 = arith.addf %130, %132 : vector<1x32xf32>
    %134 = vector.broadcast %1 : f32 to vector<1x32xf32>
    %135 = arith.mulf %133, %134 : vector<1x32xf32>
    %136 = vector.broadcast %123 : vector<1x1xf32> to vector<1x32xf32>
    %137 = arith.mulf %136, %37 : vector<1x32xf32>
    %138 = vector.broadcast %124 : vector<1x1xf32> to vector<1x32xf32>
    %139 = arith.mulf %138, %38 : vector<1x32xf32>
    %140 = arith.addf %137, %139 : vector<1x32xf32>
    %141 = vector.broadcast %1 : f32 to vector<1x32xf32>
    %142 = arith.mulf %140, %141 : vector<1x32xf32>
    %143 = arith.mulf %39, %39 : vector<1x32xf32>
    %cst_37 = arith.constant dense<0.000000e+00> : vector<1xf32>
    %144 = vector.multi_reduction <add>, %143, %cst_37 [1] : vector<1x32xf32> to vector<1xf32>
    %145 = vector.shape_cast %144 : vector<1xf32> to vector<1x1xf32>
    %146 = vector.broadcast %0 : f32 to vector<1x1xf32>
    %147 = arith.addf %145, %146 : vector<1x1xf32>
    %148 = arith.mulf %39, %40 : vector<1x32xf32>
    %cst_38 = arith.constant dense<0.000000e+00> : vector<1xf32>
    %149 = vector.multi_reduction <add>, %148, %cst_38 [1] : vector<1x32xf32> to vector<1xf32>
    %150 = vector.shape_cast %149 : vector<1xf32> to vector<1x1xf32>
    %151 = arith.mulf %40, %40 : vector<1x32xf32>
    %cst_39 = arith.constant dense<0.000000e+00> : vector<1xf32>
    %152 = vector.multi_reduction <add>, %151, %cst_39 [1] : vector<1x32xf32> to vector<1xf32>
    %153 = vector.shape_cast %152 : vector<1xf32> to vector<1x1xf32>
    %154 = vector.broadcast %0 : f32 to vector<1x1xf32>
    %155 = arith.addf %153, %154 : vector<1x1xf32>
    %cst_40 = arith.constant 1.000000e+00 : f32
    %156 = vector.broadcast %cst_40 : f32 to vector<1x1xf32>
    %cst_41 = arith.constant 0.000000e+00 : f32
    %157 = vector.broadcast %cst_41 : f32 to vector<1x1xf32>
    %cst_42 = arith.constant 0.000000e+00 : f32
    %158 = vector.broadcast %cst_42 : f32 to vector<1x1xf32>
    %cst_43 = arith.constant 1.000000e+00 : f32
    %159 = vector.broadcast %cst_43 : f32 to vector<1x1xf32>
    %cst_44 = arith.constant 1.000000e+00 : f32
    %160 = vector.broadcast %cst_44 : f32 to vector<1x1xf32>
    %161 = arith.divf %160, %147 : vector<1x1xf32>
    %162 = arith.mulf %150, %161 : vector<1x1xf32>
    %163 = arith.mulf %156, %161 : vector<1x1xf32>
    %164 = arith.mulf %157, %161 : vector<1x1xf32>
    %165 = arith.mulf %150, %162 : vector<1x1xf32>
    %166 = arith.subf %155, %165 : vector<1x1xf32>
    %167 = arith.mulf %150, %163 : vector<1x1xf32>
    %168 = arith.subf %158, %167 : vector<1x1xf32>
    %169 = arith.mulf %150, %164 : vector<1x1xf32>
    %170 = arith.subf %159, %169 : vector<1x1xf32>
    %cst_45 = arith.constant 1.000000e+00 : f32
    %171 = vector.broadcast %cst_45 : f32 to vector<1x1xf32>
    %172 = arith.divf %171, %166 : vector<1x1xf32>
    %173 = arith.mulf %168, %172 : vector<1x1xf32>
    %174 = arith.mulf %170, %172 : vector<1x1xf32>
    %175 = arith.mulf %162, %173 : vector<1x1xf32>
    %176 = arith.subf %163, %175 : vector<1x1xf32>
    %177 = arith.mulf %162, %174 : vector<1x1xf32>
    %178 = arith.subf %164, %177 : vector<1x1xf32>
    %179 = vector.broadcast %176 : vector<1x1xf32> to vector<1x32xf32>
    %180 = arith.mulf %179, %39 : vector<1x32xf32>
    %181 = vector.broadcast %178 : vector<1x1xf32> to vector<1x32xf32>
    %182 = arith.mulf %181, %40 : vector<1x32xf32>
    %183 = arith.addf %180, %182 : vector<1x32xf32>
    %184 = vector.broadcast %1 : f32 to vector<1x32xf32>
    %185 = arith.mulf %183, %184 : vector<1x32xf32>
    %186 = vector.broadcast %173 : vector<1x1xf32> to vector<1x32xf32>
    %187 = arith.mulf %186, %39 : vector<1x32xf32>
    %188 = vector.broadcast %174 : vector<1x1xf32> to vector<1x32xf32>
    %189 = arith.mulf %188, %40 : vector<1x32xf32>
    %190 = arith.addf %187, %189 : vector<1x32xf32>
    %191 = vector.broadcast %1 : f32 to vector<1x32xf32>
    %192 = arith.mulf %190, %191 : vector<1x32xf32>
    %193 = arith.mulf %41, %41 : vector<1x32xf32>
    %cst_46 = arith.constant dense<0.000000e+00> : vector<1xf32>
    %194 = vector.multi_reduction <add>, %193, %cst_46 [1] : vector<1x32xf32> to vector<1xf32>
    %195 = vector.shape_cast %194 : vector<1xf32> to vector<1x1xf32>
    %196 = vector.broadcast %0 : f32 to vector<1x1xf32>
    %197 = arith.addf %195, %196 : vector<1x1xf32>
    %198 = arith.mulf %41, %42 : vector<1x32xf32>
    %cst_47 = arith.constant dense<0.000000e+00> : vector<1xf32>
    %199 = vector.multi_reduction <add>, %198, %cst_47 [1] : vector<1x32xf32> to vector<1xf32>
    %200 = vector.shape_cast %199 : vector<1xf32> to vector<1x1xf32>
    %201 = arith.mulf %42, %42 : vector<1x32xf32>
    %cst_48 = arith.constant dense<0.000000e+00> : vector<1xf32>
    %202 = vector.multi_reduction <add>, %201, %cst_48 [1] : vector<1x32xf32> to vector<1xf32>
    %203 = vector.shape_cast %202 : vector<1xf32> to vector<1x1xf32>
    %204 = vector.broadcast %0 : f32 to vector<1x1xf32>
    %205 = arith.addf %203, %204 : vector<1x1xf32>
    %cst_49 = arith.constant 1.000000e+00 : f32
    %206 = vector.broadcast %cst_49 : f32 to vector<1x1xf32>
    %cst_50 = arith.constant 0.000000e+00 : f32
    %207 = vector.broadcast %cst_50 : f32 to vector<1x1xf32>
    %cst_51 = arith.constant 0.000000e+00 : f32
    %208 = vector.broadcast %cst_51 : f32 to vector<1x1xf32>
    %cst_52 = arith.constant 1.000000e+00 : f32
    %209 = vector.broadcast %cst_52 : f32 to vector<1x1xf32>
    %cst_53 = arith.constant 1.000000e+00 : f32
    %210 = vector.broadcast %cst_53 : f32 to vector<1x1xf32>
    %211 = arith.divf %210, %197 : vector<1x1xf32>
    %212 = arith.mulf %200, %211 : vector<1x1xf32>
    %213 = arith.mulf %206, %211 : vector<1x1xf32>
    %214 = arith.mulf %207, %211 : vector<1x1xf32>
    %215 = arith.mulf %200, %212 : vector<1x1xf32>
    %216 = arith.subf %205, %215 : vector<1x1xf32>
    %217 = arith.mulf %200, %213 : vector<1x1xf32>
    %218 = arith.subf %208, %217 : vector<1x1xf32>
    %219 = arith.mulf %200, %214 : vector<1x1xf32>
    %220 = arith.subf %209, %219 : vector<1x1xf32>
    %cst_54 = arith.constant 1.000000e+00 : f32
    %221 = vector.broadcast %cst_54 : f32 to vector<1x1xf32>
    %222 = arith.divf %221, %216 : vector<1x1xf32>
    %223 = arith.mulf %218, %222 : vector<1x1xf32>
    %224 = arith.mulf %220, %222 : vector<1x1xf32>
    %225 = arith.mulf %212, %223 : vector<1x1xf32>
    %226 = arith.subf %213, %225 : vector<1x1xf32>
    %227 = arith.mulf %212, %224 : vector<1x1xf32>
    %228 = arith.subf %214, %227 : vector<1x1xf32>
    %229 = vector.broadcast %226 : vector<1x1xf32> to vector<1x32xf32>
    %230 = arith.mulf %229, %41 : vector<1x32xf32>
    %231 = vector.broadcast %228 : vector<1x1xf32> to vector<1x32xf32>
    %232 = arith.mulf %231, %42 : vector<1x32xf32>
    %233 = arith.addf %230, %232 : vector<1x32xf32>
    %234 = vector.broadcast %1 : f32 to vector<1x32xf32>
    %235 = arith.mulf %233, %234 : vector<1x32xf32>
    %236 = vector.broadcast %223 : vector<1x1xf32> to vector<1x32xf32>
    %237 = arith.mulf %236, %41 : vector<1x32xf32>
    %238 = vector.broadcast %224 : vector<1x1xf32> to vector<1x32xf32>
    %239 = arith.mulf %238, %42 : vector<1x32xf32>
    %240 = arith.addf %237, %239 : vector<1x32xf32>
    %241 = vector.broadcast %1 : f32 to vector<1x32xf32>
    %242 = arith.mulf %240, %241 : vector<1x32xf32>
    %243 = tpu.concatenate %29, %36, %37, %38, %39, %40, %41, %42 in 0 : vector<1x32xf32>, vector<1x32xf32>, vector<1x32xf32>, vector<1x32xf32>, vector<1x32xf32>, vector<1x32xf32>, vector<1x32xf32>, vector<1x32xf32> -> vector<8x32xf32>
    %c0_55 = arith.constant 0 : index
    %c0_56 = arith.constant 0 : index
    %244 = vector.load %arg8[%c0_55, %c0_56] : memref<8x32xf32, #tpu.memory_space<vmem>>, vector<8x32xf32>
    tpu.vector_store %arg8[%c0_55, %c0_56], %243 {strides = array<i32>} : memref<8x32xf32, #tpu.memory_space<vmem>>, vector<8x32xf32>,
    %245 = tpu.concatenate %85, %92, %135, %142, %185, %192, %235, %242 in 0 : vector<1x32xf32>, vector<1x32xf32>, vector<1x32xf32>, vector<1x32xf32>, vector<1x32xf32>, vector<1x32xf32>, vector<1x32xf32>, vector<1x32xf32> -> vector<8x32xf32>
    %c0_57 = arith.constant 0 : index
    %c0_58 = arith.constant 0 : index
    %246 = vector.load %arg9[%c0_57, %c0_58] : memref<8x32xf32, #tpu.memory_space<vmem>>, vector<8x32xf32>
    tpu.vector_store %arg9[%c0_57, %c0_58], %245 {strides = array<i32>} : memref<8x32xf32, #tpu.memory_space<vmem>>, vector<8x32xf32>,
    return
  }
}

</mosaic_0001>

<llo_original>
// kernel: tpu_custom_call.1
$region0: #{tpu_custom_call.1}
  #allocation0 [shape = 'u32[]', space=smem, size = 0x4, offset = 0x4, fixed_abs, tag = 'smem constant byte address 0x4 - core index']
  #allocation1 [shape = 'u32[144,128]{1,0:T(1,128)}', space=vmem, size = 0x12000, scoped, tag = 'internal scratch']
  %s0 = inlined_call_operand.hbm [shape: f32[2], index: 0, kind: input, shape index: {}]
  %s1 = inlined_call_operand.hbm [shape: bf16[6,32], index: 1, kind: input, shape index: {}]
  %s2 = inlined_call_operand.hbm [shape: bf16[6,32], index: 2, kind: input, shape index: {}]
  %s3 = inlined_call_operand.hbm [shape: bf16[32,32], index: 3, kind: input, shape index: {}]
  %s4 = inlined_call_operand.vmem [shape: f32[1,32], index: 4, kind: input, shape index: {}]
  %s5 = inlined_call_operand.vmem [shape: bf16[32,32], index: 5, kind: input, shape index: {}]
  %s6 = inlined_call_operand.vmem [shape: f32[1,32], index: 6, kind: input, shape index: {}]
  %s7 = inlined_call_operand.hbm [shape: f32[6,32], index: 7, kind: output, shape index: {0}]
  %s8 = inlined_call_operand.hbm [shape: f32[8,32], index: 8, kind: output, shape index: {1}]
  %s9 = inlined_call_operand.hbm [shape: f32[8,32], index: 9, kind: output, shape index: {2}]
  %10 = xla_tuple %s7, %s8, %s9
  %s11 = sld [smem:[#allocation0]]
  $region70: #{tpu_custom_call.1} parent=0
    _
  %s13 = ssub.s32 1, %s11
  %s14 = scalar_select 0, %s13, %s11
  $region1: #{tpu_custom_call.1} parent=0
    #allocation2 [shape = 'u8[512]{0}', space=smem, size = 0x200, scoped, tag = 'input window, operand 0, single buffered']
    #allocation3 [shape = 's32[1]{0}', space=sflag, size = 0x4, scoped, tag = 'scoped memory for tpu_custom_call.1']
    #allocation4 [shape = 's32[1]{0}', space=sflag, size = 0x4, scoped, tag = 'scoped memory for tpu_custom_call.1']
    #allocation5 [shape = 's32[1]{0}', space=sflag, size = 0x4, scoped, tag = 'scoped memory for tpu_custom_call.1']
    #allocation6 [shape = 'u8[2048]{0}', space=vmem, size = 0x800, scoped, tag = 'input window, operand 1, single buffered']
    #allocation7 [shape = 'u8[2048]{0}', space=vmem, size = 0x800, scoped, tag = 'input window, operand 2, single buffered']
    #allocation8 [shape = 's32[1]{0}', space=sflag, size = 0x4, scoped, tag = 'scoped memory for tpu_custom_call.1']
    #allocation9 [shape = 'u8[8192]{0}', space=vmem, size = 0x2000, scoped, tag = 'input window, operand 3, single buffered']
    #allocation10 [shape = 'u8[4096]{0}', space=vmem, size = 0x1000, scoped, tag = 'output window, operand 0, single buffered']
    #allocation11 [shape = 'u8[4096]{0}', space=vmem, size = 0x1000, scoped, tag = 'output window, operand 1, single buffered']
    #allocation12 [shape = 's32[1]{0}', space=sflag, size = 0x4, scoped, tag = 'scoped memory for tpu_custom_call.1']
    #allocation13 [shape = 'u8[4096]{0}', space=vmem, size = 0x1000, scoped, tag = 'output window, operand 2, single buffered']
    %15 = vsyncpa [#allocation5], 0
    %16 = vsyncpa [#allocation3], 0
    %17 = vsyncpa [#allocation8], 0
    %18 = vsyncpa [#allocation4], 0
    %19 = vsyncpa [#allocation12], 0
    // Predicated region
    $region2: #{tpu_custom_call.1} parent=1 // pred_check
      _
    $region3: #{tpu_custom_call.1} parent=1 // pred_check_branch
      %21 = sbr.rel (0) target = $region5
    $region4: #{tpu_custom_call.1} parent=1 // pred_region
      %s23 = ssub.s32 16, 16
      %24 = vsyncadd [#allocation5], %s23
      %27 = dma.hbm_to_smem %s0, 16, [#allocation2], [#allocation5]
    $region5: #{tpu_custom_call.1} parent=1 // pred_fallthru
      _
    // Predicated region
    $region6: #{tpu_custom_call.1} parent=1 // pred_check
      _
    $region7: #{tpu_custom_call.1} parent=1 // pred_check_branch
      %29 = sbr.rel (0) target = $region9
    $region8: #{tpu_custom_call.1} parent=1 // pred_region
      %s31 = ssub.s32 64, 64
      %32 = vsyncadd [#allocation3], %s31
      %s34 = sshll.u32 [#allocation6], 4
      %s35 = int_to_ptr.vmem [resolvable:$true] %s34
      %37 = dma.hbm_to_vmem [thread:$0]  %s1, 64, %s35, [#allocation3]
    $region9: #{tpu_custom_call.1} parent=1 // pred_fallthru
      _
    // Predicated region
    $region10: #{tpu_custom_call.1} parent=1 // pred_check
      _
    $region11: #{tpu_custom_call.1} parent=1 // pred_check_branch
      %39 = sbr.rel (0) target = $region13
    $region12: #{tpu_custom_call.1} parent=1 // pred_region
      %s41 = ssub.s32 64, 64
      %42 = vsyncadd [#allocation8], %s41
      %s44 = sshll.u32 [#allocation7], 4
      %s45 = int_to_ptr.vmem [resolvable:$true] %s44
      %47 = dma.hbm_to_vmem [thread:$0]  %s2, 64, %s45, [#allocation8]
    $region13: #{tpu_custom_call.1} parent=1 // pred_fallthru
      _
    // Predicated region
    $region14: #{tpu_custom_call.1} parent=1 // pred_check
      _
    $region15: #{tpu_custom_call.1} parent=1 // pred_check_branch
      %49 = sbr.rel (0) target = $region17
    $region16: #{tpu_custom_call.1} parent=1 // pred_region
      %s51 = ssub.s32 256, 256
      %52 = vsyncadd [#allocation8], %s51
      %s53 = sshll.u32 [#allocation9], 4
      %s54 = int_to_ptr.vmem [resolvable:$true] %s53
      %59 = dma.hbm_to_vmem [thread:$0]  %s3, 256, %s54, [#allocation8], 64, 64, 4
    $region17: #{tpu_custom_call.1} parent=1 // pred_fallthru
      _
    // Predicated region
    $region18: #{tpu_custom_call.1} parent=1 // pred_check
      _
    $region19: #{tpu_custom_call.1} parent=1 // pred_check_branch
      %61 = sbr.rel (0) target = $region21
    $region20: #{tpu_custom_call.1} parent=1 // pred_region
      _
    $region21: #{tpu_custom_call.1} parent=1 // pred_fallthru
      _
    // Predicated region
    $region22: #{tpu_custom_call.1} parent=1 // pred_check
      _
    $region23: #{tpu_custom_call.1} parent=1 // pred_check_branch
      %63 = sbr.rel (0) target = $region25
    $region24: #{tpu_custom_call.1} parent=1 // pred_region
      _
    $region25: #{tpu_custom_call.1} parent=1 // pred_fallthru
      _
    // Predicated region
    $region26: #{tpu_custom_call.1} parent=1 // pred_check
      _
    $region27: #{tpu_custom_call.1} parent=1 // pred_check_branch
      %65 = sbr.rel (0) target = $region29
    $region28: #{tpu_custom_call.1} parent=1 // pred_region
      _
    $region29: #{tpu_custom_call.1} parent=1 // pred_fallthru
      _
    // Predicated region
    $region30: #{tpu_custom_call.1} parent=1 // pred_check
      _
    $region31: #{tpu_custom_call.1} parent=1 // pred_check_branch
      %67 = sbr.rel (0) target = $region33
    $region32: #{tpu_custom_call.1} parent=1 // pred_region
      %68 = dma.done [#allocation5], 16
    $region33: #{tpu_custom_call.1} parent=1 // pred_fallthru
      _
    // Predicated region
    $region34: #{tpu_custom_call.1} parent=1 // pred_check
      _
    $region35: #{tpu_custom_call.1} parent=1 // pred_check_branch
      %70 = sbr.rel (0) target = $region37
    $region36: #{tpu_custom_call.1} parent=1 // pred_region
      %71 = dma.done [#allocation3], 64
    $region37: #{tpu_custom_call.1} parent=1 // pred_fallthru
      _
    // Predicated region
    $region38: #{tpu_custom_call.1} parent=1 // pred_check
      _
    $region39: #{tpu_custom_call.1} parent=1 // pred_check_branch
      %73 = sbr.rel (0) target = $region41
    $region40: #{tpu_custom_call.1} parent=1 // pred_region
      %74 = dma.done [#allocation8], 64
    $region41: #{tpu_custom_call.1} parent=1 // pred_fallthru
      _
    // Predicated region
    $region42: #{tpu_custom_call.1} parent=1 // pred_check
      _
    $region43: #{tpu_custom_call.1} parent=1 // pred_check_branch
      %76 = sbr.rel (0) target = $region45
    $region44: #{tpu_custom_call.1} parent=1 // pred_region
      %77 = dma.done [#allocation8], 256
    $region45: #{tpu_custom_call.1} parent=1 // pred_fallthru
      _
    %78 = sfence
    %s80 = sld [smem:[#allocation2]]
    %s81 = sld [smem:[#allocation2 + $0x1]]
    %v82 = vld [vmem:[#allocation9] sm:$0xf]
    %v83 = vld [vmem:[#allocation9 + $0x4] sm:$0xf]
    %v84 = vld [vmem:[#allocation9 + $0x8] sm:$0xf]
    %v85 = vld [vmem:[#allocation9 + $0xc] sm:$0xf]
    %v86 = vld [vmem:[%s5] sm:$0xf]
    %v87 = vld [vmem:[%s5 + $0x4] sm:$0xf]
    %v88 = vld [vmem:[%s5 + $0x8] sm:$0xf]
    %v89 = vld [vmem:[%s5 + $0xc] sm:$0xf]
    %v90 = vld [vmem:[%s4] sm:$0x1]
    %v91 = vld [vmem:[%s6] sm:$0x1]
    %v92 = vld [vmem:[#allocation6] sm:$0x7]
    %v94 = vlaneseq
    %v95 = vshrl.u32 %v94, 7
    %v96 = vsub.s32 0, %v95
    %v97 = vrot.slane %v90, %v96
    %v103 = vunpack.c.l.b16 %v82
    %v104 = vunpack.c.l.b16 %v83
    %v105 = vunpack.c.l.b16 %v84
    %v106 = vunpack.c.l.b16 %v85
    %v107 = vpack.c.b16 %v104, %v103
    %v108 = vpack.c.b16 %v106, %v105
    %vm111 = vcmask 261120
    %v113 = vsel %vm111, %v92, 0
    %115 = vmatprep.subr.bf16.mxu0 0
    %116 = vmatpush1.bf16.msra.mxu0 %v107
    %117 = vmatprep.subr.bf16.mxu0 0
    %118 = vmatpush1.bf16.msra.mxu0 %v108
    %119 = vmatprep.subr.bf16.mxu0 0
    %120 = vmatpush1.bf16.msra.mxu0 0
    %121 = vmatprep.subr.bf16.mxu0 0
    %122 = vmatpush1.bf16.msra.mxu0 0
    %123 = vmatprep.subr.bf16.mxu0 0
    %124 = vmatpush1.bf16.msra.mxu0 0
    %125 = vmatprep.subr.bf16.mxu0 0
    %126 = vmatpush1.bf16.msra.mxu0 0
    %127 = vmatprep.subr.bf16.mxu0 0
    %128 = vmatpush1.bf16.msra.mxu0 0
    %129 = vmatprep.subr.bf16.mxu0 0
    %130 = vmatpush1.bf16.msra.mxu0 0
    %131 = vmatprep.subr.bf16.mxu0 0
    %132 = vmatpush1.bf16.msra.mxu0 0
    %133 = vmatprep.subr.bf16.mxu0 0
    %134 = vmatpush1.bf16.msra.mxu0 0
    %135 = vmatprep.subr.bf16.mxu0 0
    %136 = vmatpush1.bf16.msra.mxu0 0
    %137 = vmatprep.subr.bf16.mxu0 0
    %138 = vmatpush1.bf16.msra.mxu0 0
    %139 = vmatprep.subr.bf16.mxu0 0
    %140 = vmatpush1.bf16.msra.mxu0 0
    %141 = vmatprep.subr.bf16.mxu0 0
    %142 = vmatpush1.bf16.msra.mxu0 0
    %143 = vmatprep.subr.bf16.mxu0 0
    %144 = vmatpush1.bf16.msra.mxu0 0
    %145 = vmatprep.subr.bf16.mxu0 0
    %146 = vmatpush1.bf16.msra.mxu0 0
    %147 = vmatprep.mubr.bf16.mxu0 0
    %148 = vmatmul.mubr.bf16.gmra.mrb[0].mxu0 %v113
    %v149 = vpop.f32.mrb[0].mxu0
    %v150 = vadd.f32 %v97, %v149
    %v151 = vpop.f32.mrb[0].mxu0
    %v152 = vpop.f32.mrb[0].mxu0
    %v153 = vpop.f32.mrb[0].mxu0
    %154 = vdwg.mxu0
    %v155 = vpack.c.bf16 %v150, %v150
    %v157 = vlaneseq
    %v158 = vshrl.u32 %v157, 7
    %v159 = vsub.s32 0, %v158
    %v160 = vrot.slane %v91, %v159
    %v166 = vunpack.c.l.b16 %v86
    %v167 = vunpack.c.l.b16 %v87
    %v168 = vunpack.c.l.b16 %v88
    %v169 = vunpack.c.l.b16 %v89
    %v170 = vpack.c.b16 %v167, %v166
    %v171 = vpack.c.b16 %v169, %v168
    %v175 = vsel %vm111, %v155, 0
    %177 = vmatprep.subr.bf16.mxu0 0
    %178 = vmatpush1.bf16.msra.mxu0 %v170
    %179 = vmatprep.subr.bf16.mxu0 0
    %180 = vmatpush1.bf16.msra.mxu0 %v171
    %181 = vmatprep.subr.bf16.mxu0 0
    %182 = vmatpush1.bf16.msra.mxu0 0
    %183 = vmatprep.subr.bf16.mxu0 0
    %184 = vmatpush1.bf16.msra.mxu0 0
    %185 = vmatprep.subr.bf16.mxu0 0
    %186 = vmatpush1.bf16.msra.mxu0 0
    %187 = vmatprep.subr.bf16.mxu0 0
    %188 = vmatpush1.bf16.msra.mxu0 0
    %189 = vmatprep.subr.bf16.mxu0 0
    %190 = vmatpush1.bf16.msra.mxu0 0
    %191 = vmatprep.subr.bf16.mxu0 0
    %192 = vmatpush1.bf16.msra.mxu0 0
    %193 = vmatprep.subr.bf16.mxu0 0
    %194 = vmatpush1.bf16.msra.mxu0 0
    %195 = vmatprep.subr.bf16.mxu0 0
    %196 = vmatpush1.bf16.msra.mxu0 0
    %197 = vmatprep.subr.bf16.mxu0 0
    %198 = vmatpush1.bf16.msra.mxu0 0
    %199 = vmatprep.subr.bf16.mxu0 0
    %200 = vmatpush1.bf16.msra.mxu0 0
    %201 = vmatprep.subr.bf16.mxu0 0
    %202 = vmatpush1.bf16.msra.mxu0 0
    %203 = vmatprep.subr.bf16.mxu0 0
    %204 = vmatpush1.bf16.msra.mxu0 0
    %205 = vmatprep.subr.bf16.mxu0 0
    %206 = vmatpush1.bf16.msra.mxu0 0
    %207 = vmatprep.subr.bf16.mxu0 0
    %208 = vmatpush1.bf16.msra.mxu0 0
    %209 = vmatprep.mubr.bf16.mxu0 0
    %210 = vmatmul.mubr.bf16.gmra.mrb[0].mxu0 %v175
    %v211 = vpop.f32.mrb[0].mxu0
    %v212 = vadd.f32 %v160, %v211
    %v213 = vpop.f32.mrb[0].mxu0
    %v214 = vpop.f32.mrb[0].mxu0
    %v215 = vpop.f32.mrb[0].mxu0
    %216 = vdwg.mxu0
    %v217 = vld [vmem:[#allocation7] sm:$0x7]
    %v219 = vsel %vm111, %v217, 0
    %221 = vmatprep.subr.bf16.mxu0 0
    %222 = vmatpush1.bf16.msra.mxu0 %v107
    %223 = vmatprep.subr.bf16.mxu0 0
    %224 = vmatpush1.bf16.msra.mxu0 %v108
    %225 = vmatprep.subr.bf16.mxu0 0
    %226 = vmatpush1.bf16.msra.mxu0 0
    %227 = vmatprep.subr.bf16.mxu0 0
    %228 = vmatpush1.bf16.msra.mxu0 0
    %229 = vmatprep.subr.bf16.mxu0 0
    %230 = vmatpush1.bf16.msra.mxu0 0
    %231 = vmatprep.subr.bf16.mxu0 0
    %232 = vmatpush1.bf16.msra.mxu0 0
    %233 = vmatprep.subr.bf16.mxu0 0
    %234 = vmatpush1.bf16.msra.mxu0 0
    %235 = vmatprep.subr.bf16.mxu0 0
    %236 = vmatpush1.bf16.msra.mxu0 0
    %237 = vmatprep.subr.bf16.mxu0 0
    %238 = vmatpush1.bf16.msra.mxu0 0
    %239 = vmatprep.subr.bf16.mxu0 0
    %240 = vmatpush1.bf16.msra.mxu0 0
    %241 = vmatprep.subr.bf16.mxu0 0
    %242 = vmatpush1.bf16.msra.mxu0 0
    %243 = vmatprep.subr.bf16.mxu0 0
    %244 = vmatpush1.bf16.msra.mxu0 0
    %245 = vmatprep.subr.bf16.mxu0 0
    %246 = vmatpush1.bf16.msra.mxu0 0
    %247 = vmatprep.subr.bf16.mxu0 0
    %248 = vmatpush1.bf16.msra.mxu0 0
    %249 = vmatprep.subr.bf16.mxu0 0
    %250 = vmatpush1.bf16.msra.mxu0 0
    %251 = vmatprep.subr.bf16.mxu0 0
    %252 = vmatpush1.bf16.msra.mxu0 0
    %253 = vmatprep.mubr.bf16.mxu0 0
    %254 = vmatmul.mubr.bf16.gmra.mrb[0].mxu0 %v219
    %v255 = vpop.f32.mrb[0].mxu0
    %v256 = vadd.f32 %v97, %v255
    %v257 = vpop.f32.mrb[0].mxu0
    %v258 = vpop.f32.mrb[0].mxu0
    %v259 = vpop.f32.mrb[0].mxu0
    %260 = vdwg.mxu0
    %v261 = vpack.c.bf16 %v256, %v256
    %v263 = vsel %vm111, %v261, 0
    %265 = vmatprep.subr.bf16.mxu0 0
    %266 = vmatpush1.bf16.msra.mxu0 %v170
    %267 = vmatprep.subr.bf16.mxu0 0
    %268 = vmatpush1.bf16.msra.mxu0 %v171
    %269 = vmatprep.subr.bf16.mxu0 0
    %270 = vmatpush1.bf16.msra.mxu0 0
    %271 = vmatprep.subr.bf16.mxu0 0
    %272 = vmatpush1.bf16.msra.mxu0 0
    %273 = vmatprep.subr.bf16.mxu0 0
    %274 = vmatpush1.bf16.msra.mxu0 0
    %275 = vmatprep.subr.bf16.mxu0 0
    %276 = vmatpush1.bf16.msra.mxu0 0
    %277 = vmatprep.subr.bf16.mxu0 0
    %278 = vmatpush1.bf16.msra.mxu0 0
    %279 = vmatprep.subr.bf16.mxu0 0
    %280 = vmatpush1.bf16.msra.mxu0 0
    %281 = vmatprep.subr.bf16.mxu0 0
    %282 = vmatpush1.bf16.msra.mxu0 0
    %283 = vmatprep.subr.bf16.mxu0 0
    %284 = vmatpush1.bf16.msra.mxu0 0
    %285 = vmatprep.subr.bf16.mxu0 0
    %286 = vmatpush1.bf16.msra.mxu0 0
    %287 = vmatprep.subr.bf16.mxu0 0
    %288 = vmatpush1.bf16.msra.mxu0 0
    %289 = vmatprep.subr.bf16.mxu0 0
    %290 = vmatpush1.bf16.msra.mxu0 0
    %291 = vmatprep.subr.bf16.mxu0 0
    %292 = vmatpush1.bf16.msra.mxu0 0
    %293 = vmatprep.subr.bf16.mxu0 0
    %294 = vmatpush1.bf16.msra.mxu0 0
    %295 = vmatprep.subr.bf16.mxu0 0
    %296 = vmatpush1.bf16.msra.mxu0 0
    %297 = vmatprep.mubr.bf16.mxu0 0
    %298 = vmatmul.mubr.bf16.gmra.mrb[0].mxu0 %v263
    %v299 = vpop.f32.mrb[0].mxu0
    %v300 = vadd.f32 %v160, %v299
    %v301 = vpop.f32.mrb[0].mxu0
    %v302 = vpop.f32.mrb[0].mxu0
    %v303 = vpop.f32.mrb[0].mxu0
    %304 = vdwg.mxu0
    %vm305 = vcmask 259072
    %306 = vst.msk [vmem:[#allocation10] sm:$0x3f] %vm305, %v212
    %v308 = vrot.slane %v300, 2
    %v310 = vadd.f32 %v300, %v308
    %v311 = vrot.slane %v300, 4
    %v313 = vadd.f32 %v310, %v311
    %v314 = vmul.f32 %v313, 0.33333334
    %v315 = vmul.f32 %v314, %v314
    %vm316 = vcmask 253952
    %v317 = vsel %vm316, %v315, 0.0
    %318 = vadd.xlane.f32.xlu0 %v317
    %v319 = vpop.xlane.xlu0 %318
    %v320 = vstv %s80
    %v321 = vadd.f32 %v319, %v320
    %v323 = vrot.slane %v314, 1
    %v325 = vmul.f32 %v314, %v323
    %v326 = vsel %vm316, %v325, 0.0
    %327 = vadd.xlane.f32.xlu0 %v326
    %v328 = vpop.xlane.xlu0 %327
    %vm329 = vcmask 254977
    %v330 = vsel %vm329, %v315, 0.0
    %331 = vadd.xlane.f32.xlu0 %v330
    %v332 = vpop.xlane.xlu0 %331
    %v333 = vadd.f32 %v332, %v320
    %v334 = vrcp.pop %v321
    %v335 = vmul.f32 1.0, %v334
    %v336 = vmul.f32 %v328, %v335
    %v337 = vmul.f32 %v335, 0.0
    %v338 = vmul.f32 %v328, %v336
    %v340 = vrot.slane %v338, 7
    %v342 = vsub.f32 %v333, %v340
    %v343 = vsub.f32 0.0, %v336
    %v344 = vmul.f32 %v328, %v337
    %v345 = vsub.f32 1.0, %v344
    %v346 = vrcp.pop %v342
    %v347 = vmul.f32 1.0, %v346
    %v349 = vrot.slane %v347, 1
    %v351 = vmul.f32 %v343, %v349
    %v352 = vmul.f32 %v345, %v349
    %v353 = vmul.f32 %v336, %v351
    %v354 = vsub.f32 %v335, %v353
    %v355 = vmul.f32 %v336, %v352
    %v356 = vsub.f32 %v337, %v355
    %358 = vset.pattern.permute.xlu0 0
    %359 = vperm.xlu0 %358, %v354
    %v360 = vpop.permute.xlu0 %359
    %v362 = vmul.f32 %v360, %v314
    %364 = vset.pattern.permute.xlu0 0
    %365 = vperm.xlu0 %364, %v356
    %v366 = vpop.permute.xlu0 %365
    %v368 = vmul.f32 %v366, %v323
    %v369 = vadd.f32 %v362, %v368
    %v370 = vstv %s81
    %v371 = vmul.f32 %v369, %v370
    %373 = vset.pattern.permute.xlu0 0
    %374 = vperm.xlu0 %373, %v351
    %v375 = vpop.permute.xlu0 %374
    %v377 = vmul.f32 %v375, %v314
    %379 = vset.pattern.permute.xlu0 0
    %380 = vperm.xlu0 %379, %v352
    %v381 = vpop.permute.xlu0 %380
    %v383 = vmul.f32 %v381, %v323
    %v384 = vadd.f32 %v377, %v383
    %v385 = vmul.f32 %v384, %v370
    %v386 = vmul.f32 %v212, %v212
    %v387 = vsel %vm316, %v386, 0.0
    %388 = vadd.xlane.f32.xlu0 %v387
    %v389 = vpop.xlane.xlu0 %388
    %v390 = vadd.f32 %v389, %v320
    %v392 = vrot.slane %v212, 1
    %v394 = vmul.f32 %v212, %v392
    %v395 = vsel %vm316, %v394, 0.0
    %396 = vadd.xlane.f32.xlu0 %v395
    %v397 = vpop.xlane.xlu0 %396
    %v398 = vsel %vm329, %v386, 0.0
    %399 = vadd.xlane.f32.xlu0 %v398
    %v400 = vpop.xlane.xlu0 %399
    %v401 = vadd.f32 %v400, %v320
    %v402 = vrcp.pop %v390
    %v403 = vmul.f32 1.0, %v402
    %v404 = vmul.f32 %v397, %v403
    %v405 = vmul.f32 %v403, 0.0
    %v406 = vmul.f32 %v397, %v404
    %v408 = vrot.slane %v406, 7
    %v410 = vsub.f32 %v401, %v408
    %v411 = vsub.f32 0.0, %v404
    %v412 = vmul.f32 %v397, %v405
    %v413 = vsub.f32 1.0, %v412
    %v414 = vrcp.pop %v410
    %v415 = vmul.f32 1.0, %v414
    %v417 = vrot.slane %v415, 1
    %v419 = vmul.f32 %v411, %v417
    %v420 = vmul.f32 %v413, %v417
    %v421 = vmul.f32 %v404, %v419
    %v422 = vsub.f32 %v403, %v421
    %v423 = vmul.f32 %v404, %v420
    %v424 = vsub.f32 %v405, %v423
    %426 = vset.pattern.permute.xlu0 0
    %427 = vperm.xlu0 %426, %v422
    %v428 = vpop.permute.xlu0 %427
    %v430 = vmul.f32 %v428, %v212
    %432 = vset.pattern.permute.xlu0 0
    %433 = vperm.xlu0 %432, %v424
    %v434 = vpop.permute.xlu0 %433
    %v436 = vmul.f32 %v434, %v392
    %v437 = vadd.f32 %v430, %v436
    %v438 = vmul.f32 %v437, %v370
    %440 = vset.pattern.permute.xlu0 0
    %441 = vperm.xlu0 %440, %v419
    %v442 = vpop.permute.xlu0 %441
    %v444 = vmul.f32 %v442, %v212
    %446 = vset.pattern.permute.xlu0 0
    %447 = vperm.xlu0 %446, %v420
    %v448 = vpop.permute.xlu0 %447
    %v450 = vmul.f32 %v448, %v392
    %v451 = vadd.f32 %v444, %v450
    %v452 = vmul.f32 %v451, %v370
    %vm453 = vcmask 256002
    %v454 = vsel %vm453, %v386, 0.0
    %455 = vadd.xlane.f32.xlu0 %v454
    %v456 = vpop.xlane.xlu0 %455
    %v457 = vadd.f32 %v456, %v320
    %v458 = vsel %vm453, %v394, 0.0
    %459 = vadd.xlane.f32.xlu0 %v458
    %v460 = vpop.xlane.xlu0 %459
    %vm461 = vcmask 257027
    %v462 = vsel %vm461, %v386, 0.0
    %463 = vadd.xlane.f32.xlu0 %v462
    %v464 = vpop.xlane.xlu0 %463
    %v465 = vadd.f32 %v464, %v320
    %v466 = vrcp.pop %v457
    %v467 = vmul.f32 1.0, %v466
    %v468 = vmul.f32 %v460, %v467
    %v469 = vmul.f32 %v467, 0.0
    %v470 = vmul.f32 %v460, %v468
    %v472 = vrot.slane %v470, 7
    %v474 = vsub.f32 %v465, %v472
    %v475 = vsub.f32 0.0, %v468
    %v476 = vmul.f32 %v460, %v469
    %v477 = vsub.f32 1.0, %v476
    %v478 = vrcp.pop %v474
    %v479 = vmul.f32 1.0, %v478
    %v481 = vrot.slane %v479, 1
    %v483 = vmul.f32 %v475, %v481
    %v484 = vmul.f32 %v477, %v481
    %v485 = vmul.f32 %v468, %v483
    %v486 = vsub.f32 %v467, %v485
    %v487 = vmul.f32 %v468, %v484
    %v488 = vsub.f32 %v469, %v487
    %490 = vset.pattern.permute.xlu0 0
    %491 = vperm.xlu0 %490, %v486
    %v492 = vpop.permute.xlu0 %491
    %v494 = vmul.f32 %v492, %v212
    %496 = vset.pattern.permute.xlu0 0
    %497 = vperm.xlu0 %496, %v488
    %v498 = vpop.permute.xlu0 %497
    %v500 = vmul.f32 %v498, %v392
    %v501 = vadd.f32 %v494, %v500
    %v502 = vmul.f32 %v501, %v370
    %504 = vset.pattern.permute.xlu0 0
    %505 = vperm.xlu0 %504, %v483
    %v506 = vpop.permute.xlu0 %505
    %v508 = vmul.f32 %v506, %v212
    %510 = vset.pattern.permute.xlu0 0
    %511 = vperm.xlu0 %510, %v484
    %v512 = vpop.permute.xlu0 %511
    %v514 = vmul.f32 %v512, %v392
    %v515 = vadd.f32 %v508, %v514
    %v516 = vmul.f32 %v515, %v370
    %vm517 = vcmask 258052
    %v518 = vsel %vm517, %v386, 0.0
    %519 = vadd.xlane.f32.xlu0 %v518
    %v520 = vpop.xlane.xlu0 %519
    %v521 = vadd.f32 %v520, %v320
    %v522 = vsel %vm517, %v394, 0.0
    %523 = vadd.xlane.f32.xlu0 %v522
    %v524 = vpop.xlane.xlu0 %523
    %vm525 = vcmask 259077
    %v526 = vsel %vm525, %v386, 0.0
    %527 = vadd.xlane.f32.xlu0 %v526
    %v528 = vpop.xlane.xlu0 %527
    %v529 = vadd.f32 %v528, %v320
    %v530 = vrcp.pop %v521
    %v531 = vmul.f32 1.0, %v530
    %v532 = vmul.f32 %v524, %v531
    %v533 = vmul.f32 %v531, 0.0
    %v534 = vmul.f32 %v524, %v532
    %v536 = vrot.slane %v534, 7
    %v538 = vsub.f32 %v529, %v536
    %v539 = vsub.f32 0.0, %v532
    %v540 = vmul.f32 %v524, %v533
    %v541 = vsub.f32 1.0, %v540
    %v542 = vrcp.pop %v538
    %v543 = vmul.f32 1.0, %v542
    %v545 = vrot.slane %v543, 1
    %v547 = vmul.f32 %v539, %v545
    %v548 = vmul.f32 %v541, %v545
    %v549 = vmul.f32 %v532, %v547
    %v550 = vsub.f32 %v531, %v549
    %v551 = vmul.f32 %v532, %v548
    %v552 = vsub.f32 %v533, %v551
    %554 = vset.pattern.permute.xlu0 0
    %555 = vperm.xlu0 %554, %v550
    %v556 = vpop.permute.xlu0 %555
    %v558 = vmul.f32 %v556, %v212
    %560 = vset.pattern.permute.xlu0 0
    %561 = vperm.xlu0 %560, %v552
    %v562 = vpop.permute.xlu0 %561
    %v564 = vmul.f32 %v562, %v392
    %v565 = vadd.f32 %v558, %v564
    %v566 = vmul.f32 %v565, %v370
    %568 = vset.pattern.permute.xlu0 0
    %569 = vperm.xlu0 %568, %v547
    %v570 = vpop.permute.xlu0 %569
    %v572 = vmul.f32 %v570, %v212
    %574 = vset.pattern.permute.xlu0 0
    %575 = vperm.xlu0 %574, %v548
    %v576 = vpop.permute.xlu0 %575
    %v578 = vmul.f32 %v576, %v392
    %v579 = vadd.f32 %v572, %v578
    %v580 = vmul.f32 %v579, %v370
    %v581 = vrot.slane %v212, 6
    %vm583 = vcmask 1040384
    %vm584 = vcmask 1041408
    %v585 = vsel %vm584, %v314, %v581
    %vm586 = vcmask 1042432
    %v587 = vsel %vm586, %v585, %v581
    %vm588 = vcmask 1043456
    %v589 = vsel %vm588, %v587, %v581
    %vm590 = vcmask 1044480
    %v591 = vsel %vm590, %v589, %v581
    %vm592 = vcmask 1045504
    %v593 = vsel %vm592, %v591, %v581
    %vm594 = vcmask 1046528
    %v595 = vsel %vm594, %v593, %v581
    %596 = vst.msk [vmem:[#allocation11] sm:$0xff] %vm111, %v595
    %v598 = vrot.slane %v385, 7
    %v601 = vrot.slane %v438, 6
    %v604 = vrot.slane %v452, 5
    %v607 = vrot.slane %v502, 6
    %v610 = vrot.slane %v516, 5
    %v613 = vrot.slane %v566, 6
    %v616 = vrot.slane %v580, 5
    %v618 = vsel %vm583, %v371, %v598
    %v619 = vsel %vm584, %v618, %v601
    %v620 = vsel %vm586, %v619, %v604
    %v621 = vsel %vm588, %v620, %v607
    %v622 = vsel %vm590, %v621, %v610
    %v623 = vsel %vm592, %v622, %v613
    %v624 = vsel %vm594, %v623, %v616
    %625 = vst.msk [vmem:[#allocation13] sm:$0xff] %vm111, %v624
    // Predicated region
    $region46: #{tpu_custom_call.1} parent=1 // pred_check
      _
    $region47: #{tpu_custom_call.1} parent=1 // pred_check_branch
      %627 = sbr.rel (0) target = $region49
    $region48: #{tpu_custom_call.1} parent=1 // pred_region
      %s629 = ssub.s32 128, 128
      %630 = vsyncadd [#allocation4], %s629
      %s632 = sshll.u32 [#allocation10], 4
      %s633 = int_to_ptr.vmem [resolvable:$true] %s632
      %635 = dma.vmem_to_hbm [thread:$0]  %s633, 128, %s7, [#allocation4]
    $region49: #{tpu_custom_call.1} parent=1 // pred_fallthru
      _
    // Predicated region
    $region50: #{tpu_custom_call.1} parent=1 // pred_check
      _
    $region51: #{tpu_custom_call.1} parent=1 // pred_check_branch
      %637 = sbr.rel (0) target = $region53
    $region52: #{tpu_custom_call.1} parent=1 // pred_region
      %s639 = ssub.s32 128, 128
      %640 = vsyncadd [#allocation12], %s639
      %s642 = sshll.u32 [#allocation11], 4
      %s643 = int_to_ptr.vmem [resolvable:$true] %s642
      %645 = dma.vmem_to_hbm [thread:$0]  %s643, 128, %s8, [#allocation12]
    $region53: #{tpu_custom_call.1} parent=1 // pred_fallthru
      _
    // Predicated region
    $region54: #{tpu_custom_call.1} parent=1 // pred_check
      _
    $region55: #{tpu_custom_call.1} parent=1 // pred_check_branch
      %647 = sbr.rel (0) target = $region57
    $region56: #{tpu_custom_call.1} parent=1 // pred_region
      %s649 = ssub.s32 128, 128
      %650 = vsyncadd [#allocation12], %s649
      %s652 = sshll.u32 [#allocation13], 4
      %s653 = int_to_ptr.vmem [resolvable:$true] %s652
      %655 = dma.vmem_to_hbm [thread:$0]  %s653, 128, %s9, [#allocation12]
    $region57: #{tpu_custom_call.1} parent=1 // pred_fallthru
      _
    // Predicated region
    $region58: #{tpu_custom_call.1} parent=1 // pred_check
      _
    $region59: #{tpu_custom_call.1} parent=1 // pred_check_branch
      %657 = sbr.rel (0) target = $region61
    $region60: #{tpu_custom_call.1} parent=1 // pred_region
      %658 = dma.done [#allocation4], 128
    $region61: #{tpu_custom_call.1} parent=1 // pred_fallthru
      _
    // Predicated region
    $region62: #{tpu_custom_call.1} parent=1 // pred_check
      _
    $region63: #{tpu_custom_call.1} parent=1 // pred_check_branch
      %660 = sbr.rel (0) target = $region65
    $region64: #{tpu_custom_call.1} parent=1 // pred_region
      %661 = dma.done [#allocation12], 128
    $region65: #{tpu_custom_call.1} parent=1 // pred_fallthru
      _
    // Predicated region
    $region66: #{tpu_custom_call.1} parent=1 // pred_check
      _
    $region67: #{tpu_custom_call.1} parent=1 // pred_check_branch
      %663 = sbr.rel (0) target = $region69
    $region68: #{tpu_custom_call.1} parent=1 // pred_region
      %664 = dma.done [#allocation12], 128
    $region69: #{tpu_custom_call.1} parent=1 // pred_fallthru
      _
    %665 = vsyncpa [#allocation3], 1
    %666 = vsyncpa [#allocation8], 1
    %667 = vsyncpa [#allocation4], 1
    %668 = vsyncpa [#allocation12], 1
    %669 = vsyncpa [#allocation5], 1

</llo_original>
